<compile_context>
chip_gen: v7x
topology: tpu7x:2x2x1
jax: 0.10.0
libtpu: 0.0.40
codegen_flags: <defaults>
</compile_context>

<pallas_src>
import functools

import jax
import jax.numpy as jnp
from jax import lax
from jax.experimental import pallas as pl
from jax.experimental.pallas import tpu as pltpu


def s2s2_kernel(x_ref, w_ref, b_ref, o_ref):
    # (8, D) . (tb, D)^T -> (8, tb) on the MXU; batch on lanes.  Rows 6, 7 of
    # W/bias are zero padding (sublane alignment) and are ignored below.
    y = lax.dot_general(
        w_ref[...], x_ref[...],
        dimension_numbers=(((1,), (1,)), ((), ())),
        preferred_element_type=jnp.float32,
    ) + b_ref[...]

    v1x, v1y, v1z = y[0:1, :], y[1:2, :], y[2:3, :]
    v2x, v2y, v2z = y[3:4, :], y[4:5, :], y[5:6, :]

    # e1 = v1 / ||v1||   (rsqrt: one EUP op per normalization)
    inv_n1 = lax.rsqrt(v1x * v1x + v1y * v1y + v1z * v1z)
    e1x, e1y, e1z = v1x * inv_n1, v1y * inv_n1, v1z * inv_n1

    # u2 = v2 - <e1, v2> e1 ; e2 = u2 / ||u2||
    d12 = e1x * v2x + e1y * v2y + e1z * v2z
    u2x = v2x - d12 * e1x
    u2y = v2y - d12 * e1y
    u2z = v2z - d12 * e1z
    inv_n2 = lax.rsqrt(u2x * u2x + u2y * u2y + u2z * u2z)
    e2x, e2y, e2z = u2x * inv_n2, u2y * inv_n2, u2z * inv_n2

    # e3 = e1 x e2
    e3x = e1y * e2z - e1z * e2y
    e3y = e1z * e2x - e1x * e2z
    e3z = e1x * e2y - e1y * e2x

    # Direct full-lane row stores (no concatenate, no masked lane-partial stores).
    o_ref[0:1, :] = e1x
    o_ref[1:2, :] = e1y
    o_ref[2:3, :] = e1z
    o_ref[3:4, :] = e2x
    o_ref[4:5, :] = e2y
    o_ref[5:6, :] = e2z
    o_ref[6:7, :] = e3x
    o_ref[7:8, :] = e3y
    o_ref[8:9, :] = e3z


def _default_tile(batch, in_dim):
    """Pick a batch tile: lane-aligned (mult. of 128), >=2 grid steps when possible
    (pipelining + v7x megacore), x tile capped at ~8 MiB so double-buffering stays
    well inside scoped VMEM on every generation (v7x: 64 MiB physical)."""
    if batch % 128 != 0:
        return batch                           # small / ragged batch: one full tile
    cap = min(4096, max(128, (8 << 20) // (4 * max(in_dim, 1))))
    if batch >= 256:
        cap = min(cap, batch // 2)             # guarantee >=2 grid steps
    tb = 128
    while tb * 2 <= cap and batch % (tb * 2) == 0:
        tb *= 2
    return tb


@functools.partial(jax.jit, static_argnames=("tb",))
def s2s2_mean(x, weight, bias, *, tb=None):
    """x: (B, D) f32, weight: (6, D) f32, bias: (6,) f32 -> (B, 3, 3) f32."""
    B, D = x.shape
    if tb is None:
        tb = _default_tile(B, D)
    assert B % tb == 0
    assert tb == B or tb % 128 == 0, "batch tile must be lane-aligned when tiled"

    # Pad the 6 output components to 8 rows -> sublane-aligned MXU operand.
    w_pad = jnp.zeros((8, D), jnp.float32).at[:6].set(weight.astype(jnp.float32))
    b_pad = jnp.zeros((8, 1), jnp.float32).at[:6, 0].set(bias.astype(jnp.float32))

    # Rough VMEM footprint: double-buffered x tile + W + bias + output tile.
    vmem_need = 2 * (tb * D + 8 * D + 8 + 9 * tb) * 4 + (2 << 20)

    out_cm = pl.pallas_call(
        s2s2_kernel,
        out_shape=jax.ShapeDtypeStruct((9, B), jnp.float32),
        grid_spec=pltpu.PrefetchScalarGridSpec(
            num_scalar_prefetch=0,
            grid=(B // tb,),
            in_specs=[
                pl.BlockSpec((tb, D), lambda i: (i, 0)),   # x tile over batch
                pl.BlockSpec((8, D), lambda i: (0, 0)),    # padded weight
                pl.BlockSpec((8, 1), lambda i: (0, 0)),    # padded bias column
            ],
            out_specs=pl.BlockSpec((9, tb), lambda i: (0, i)),  # lane-dense slab
        ),
        compiler_params=pltpu.CompilerParams(
            dimension_semantics=("parallel",),
            vmem_limit_bytes=int(min(max(vmem_need, 4 << 20), 64 << 20)),
        ),
        cost_estimate=pl.CostEstimate(
            flops=2 * B * D * 8,
            transcendentals=2 * B,
            bytes_accessed=(B * D + 9 * B + 8 * D + 8) * 4,
        ),
    )(x, w_pad, b_pad)

    # Component-major (9, B) -> (B, 3, 3); rows are [e1 | e2 | e3].
    return out_cm.T.reshape(B, 3, 3)


def s2s2_mean_ref(x, weight, bias):
    """Pure-JAX reference mirroring the PyTorch forward (in f32)."""
    y = jnp.dot(x, weight.T, precision=lax.Precision.HIGHEST) + bias
    v = y.reshape(-1, 2, 3)
    v1, v2 = v[:, 0], v[:, 1]
    e1 = v1 / jnp.linalg.norm(v1, axis=-1, keepdims=True)
    u2 = v2 - jnp.sum(e1 * v2, axis=-1, keepdims=True) * e1
    e2 = u2 / jnp.linalg.norm(u2, axis=-1, keepdims=True)
    e3 = jnp.cross(e1, e2)
    return jnp.stack([e1, e2, e3], axis=1)


if __name__ == "__main__":
    # Case 1: small shape consistent with the module (Linear(32 -> 6), batch 8).
    B, D = 8, 32
    kx, kw, kb = jax.random.split(jax.random.PRNGKey(0), 3)
    weight = jax.random.uniform(kw, (6, D), jnp.float32, minval=-10.0, maxval=10.0)
    bias = jax.random.uniform(kb, (6,), jnp.float32, minval=-10.0, maxval=10.0)
    x = jax.random.normal(kx, (B, D), jnp.float32)

    out = jax.block_until_ready(s2s2_mean(x, weight, bias))
    ref = s2s2_mean_ref(x, weight, bias)
    assert out.shape == (B, 3, 3)
    assert jnp.allclose(out, ref, atol=1e-3, rtol=1e-3), \
        float(jnp.max(jnp.abs(out - ref)))

    # Case 2: lane-aligned batch exercising the multi-step tiled (pipelined) path.
    B2, D2 = 256, 64
    k2x, k2w, k2b = jax.random.split(jax.random.PRNGKey(1), 3)
    weight2 = jax.random.uniform(k2w, (6, D2), jnp.float32, minval=-10.0, maxval=10.0)
    bias2 = jax.random.uniform(k2b, (6,), jnp.float32, minval=-10.0, maxval=10.0)
    x2 = jax.random.normal(k2x, (B2, D2), jnp.float32)

    out2 = jax.block_until_ready(s2s2_mean(x2, weight2, bias2))
    ref2 = s2s2_mean_ref(x2, weight2, bias2)
    assert out2.shape == (B2, 3, 3)
    assert jnp.allclose(out2, ref2, atol=1e-3, rtol=1e-3), \
        float(jnp.max(jnp.abs(out2 - ref2)))

    print("KERNEL_OK")
</pallas_src>

<mosaic_0001>
module attributes {stable_mosaic.version = 11 : i64} {
  func.func @s2s2_kernel(%arg0: i32, %arg1: memref<8x32xf32, #tpu.memory_space<vmem>>, %arg2: memref<8x32xf32, #tpu.memory_space<vmem>>, %arg3: memref<8x1xf32, #tpu.memory_space<vmem>>, %arg4: memref<9x8xf32, #tpu.memory_space<vmem>>) attributes {dimension_semantics = [#tpu.dimension_semantics<parallel>], iteration_bounds = array<i64: 1>, scalar_prefetch = 0 : i64, scratch_operands = 0 : i64, tpu.core_type = #tpu.core_type<tc>, window_params = [{transform_indices = @transform_0, window_bounds = array<i64: 8, 32>}, {pipeline_mode = #tpu.pipeline_mode<synchronous>, transform_indices = @transform_1, window_bounds = array<i64: 8, 32>}, {pipeline_mode = #tpu.pipeline_mode<synchronous>, transform_indices = @transform_2, window_bounds = array<i64: 8, 1>}, {transform_indices = @transform_3, window_bounds = array<i64: 9, 8>}]} {
    %c0 = arith.constant 0 : index
    %c0_0 = arith.constant 0 : index
    %0 = vector.load %arg2[%c0, %c0_0] : memref<8x32xf32, #tpu.memory_space<vmem>>, vector<8x32xf32>
    %c0_1 = arith.constant 0 : index
    %c0_2 = arith.constant 0 : index
    %1 = vector.load %arg1[%c0_1, %c0_2] : memref<8x32xf32, #tpu.memory_space<vmem>>, vector<8x32xf32>
    %cst = arith.constant dense<0.000000e+00> : vector<8x8xf32>
    %2 = tpu.matmul %0, %1, %cst {dimension_numbers = #tpu.dot_dimension_numbers<[1], [1], [0], [0], [0, 0, 1, 0], [], []>} : vector<8x32xf32>, vector<8x32xf32>, vector<8x8xf32> -> vector<8x8xf32>
    %c0_3 = arith.constant 0 : index
    %c0_4 = arith.constant 0 : index
    %3 = vector.load %arg3[%c0_3, %c0_4] : memref<8x1xf32, #tpu.memory_space<vmem>>, vector<8x1xf32>
    %4 = vector.broadcast %3 : vector<8x1xf32> to vector<8x8xf32>
    %5 = arith.addf %2, %4 : vector<8x8xf32>
    %6 = vector.extract_strided_slice %5 {offsets = [0, 0], sizes = [1, 8], strides = [1, 1]} : vector<8x8xf32> to vector<1x8xf32>
    %7 = vector.extract_strided_slice %5 {offsets = [1, 0], sizes = [1, 8], strides = [1, 1]} : vector<8x8xf32> to vector<1x8xf32>
    %8 = vector.extract_strided_slice %5 {offsets = [2, 0], sizes = [1, 8], strides = [1, 1]} : vector<8x8xf32> to vector<1x8xf32>
    %9 = vector.extract_strided_slice %5 {offsets = [3, 0], sizes = [1, 8], strides = [1, 1]} : vector<8x8xf32> to vector<1x8xf32>
    %10 = vector.extract_strided_slice %5 {offsets = [4, 0], sizes = [1, 8], strides = [1, 1]} : vector<8x8xf32> to vector<1x8xf32>
    %11 = vector.extract_strided_slice %5 {offsets = [5, 0], sizes = [1, 8], strides = [1, 1]} : vector<8x8xf32> to vector<1x8xf32>
    %12 = arith.mulf %6, %6 : vector<1x8xf32>
    %13 = arith.mulf %7, %7 : vector<1x8xf32>
    %14 = arith.addf %12, %13 : vector<1x8xf32>
    %15 = arith.mulf %8, %8 : vector<1x8xf32>
    %16 = arith.addf %14, %15 : vector<1x8xf32>
    %17 = math.rsqrt %16 : vector<1x8xf32>
    %18 = arith.mulf %6, %17 : vector<1x8xf32>
    %19 = arith.mulf %7, %17 : vector<1x8xf32>
    %20 = arith.mulf %8, %17 : vector<1x8xf32>
    %21 = arith.mulf %18, %9 : vector<1x8xf32>
    %22 = arith.mulf %19, %10 : vector<1x8xf32>
    %23 = arith.addf %21, %22 : vector<1x8xf32>
    %24 = arith.mulf %20, %11 : vector<1x8xf32>
    %25 = arith.addf %23, %24 : vector<1x8xf32>
    %26 = arith.mulf %25, %18 : vector<1x8xf32>
    %27 = arith.subf %9, %26 : vector<1x8xf32>
    %28 = arith.mulf %25, %19 : vector<1x8xf32>
    %29 = arith.subf %10, %28 : vector<1x8xf32>
    %30 = arith.mulf %25, %20 : vector<1x8xf32>
    %31 = arith.subf %11, %30 : vector<1x8xf32>
    %32 = arith.mulf %27, %27 : vector<1x8xf32>
    %33 = arith.mulf %29, %29 : vector<1x8xf32>
    %34 = arith.addf %32, %33 : vector<1x8xf32>
    %35 = arith.mulf %31, %31 : vector<1x8xf32>
    %36 = arith.addf %34, %35 : vector<1x8xf32>
    %37 = math.rsqrt %36 : vector<1x8xf32>
    %38 = arith.mulf %27, %37 : vector<1x8xf32>
    %39 = arith.mulf %29, %37 : vector<1x8xf32>
    %40 = arith.mulf %31, %37 : vector<1x8xf32>
    %41 = arith.mulf %19, %40 : vector<1x8xf32>
    %42 = arith.mulf %20, %39 : vector<1x8xf32>
    %43 = arith.subf %41, %42 : vector<1x8xf32>
    %44 = arith.mulf %20, %38 : vector<1x8xf32>
    %45 = arith.mulf %18, %40 : vector<1x8xf32>
    %46 = arith.subf %44, %45 : vector<1x8xf32>
    %47 = arith.mulf %18, %39 : vector<1x8xf32>
    %48 = arith.mulf %19, %38 : vector<1x8xf32>
    %49 = arith.subf %47, %48 : vector<1x8xf32>
    %c0_5 = arith.constant 0 : index
    %c0_6 = arith.constant 0 : index
    %50 = vector.load %arg4[%c0_5, %c0_6] : memref<9x8xf32, #tpu.memory_space<vmem>>, vector<1x8xf32>
    tpu.vector_store %arg4[%c0_5, %c0_6], %18 {strides = array<i32>} : memref<9x8xf32, #tpu.memory_space<vmem>>, vector<1x8xf32>,
    %c1 = arith.constant 1 : index
    %c0_7 = arith.constant 0 : index
    %51 = vector.load %arg4[%c1, %c0_7] : memref<9x8xf32, #tpu.memory_space<vmem>>, vector<1x8xf32>
    tpu.vector_store %arg4[%c1, %c0_7], %19 {strides = array<i32>} : memref<9x8xf32, #tpu.memory_space<vmem>>, vector<1x8xf32>,
    %c2 = arith.constant 2 : index
    %c0_8 = arith.constant 0 : index
    %52 = vector.load %arg4[%c2, %c0_8] : memref<9x8xf32, #tpu.memory_space<vmem>>, vector<1x8xf32>
    tpu.vector_store %arg4[%c2, %c0_8], %20 {strides = array<i32>} : memref<9x8xf32, #tpu.memory_space<vmem>>, vector<1x8xf32>,
    %c3 = arith.constant 3 : index
    %c0_9 = arith.constant 0 : index
    %53 = vector.load %arg4[%c3, %c0_9] : memref<9x8xf32, #tpu.memory_space<vmem>>, vector<1x8xf32>
    tpu.vector_store %arg4[%c3, %c0_9], %38 {strides = array<i32>} : memref<9x8xf32, #tpu.memory_space<vmem>>, vector<1x8xf32>,
    %c4 = arith.constant 4 : index
    %c0_10 = arith.constant 0 : index
    %54 = vector.load %arg4[%c4, %c0_10] : memref<9x8xf32, #tpu.memory_space<vmem>>, vector<1x8xf32>
    tpu.vector_store %arg4[%c4, %c0_10], %39 {strides = array<i32>} : memref<9x8xf32, #tpu.memory_space<vmem>>, vector<1x8xf32>,
    %c5 = arith.constant 5 : index
    %c0_11 = arith.constant 0 : index
    %55 = vector.load %arg4[%c5, %c0_11] : memref<9x8xf32, #tpu.memory_space<vmem>>, vector<1x8xf32>
    tpu.vector_store %arg4[%c5, %c0_11], %40 {strides = array<i32>} : memref<9x8xf32, #tpu.memory_space<vmem>>, vector<1x8xf32>,
    %c6 = arith.constant 6 : index
    %c0_12 = arith.constant 0 : index
    %56 = vector.load %arg4[%c6, %c0_12] : memref<9x8xf32, #tpu.memory_space<vmem>>, vector<1x8xf32>
    tpu.vector_store %arg4[%c6, %c0_12], %43 {strides = array<i32>} : memref<9x8xf32, #tpu.memory_space<vmem>>, vector<1x8xf32>,
    %c7 = arith.constant 7 : index
    %c0_13 = arith.constant 0 : index
    %57 = vector.load %arg4[%c7, %c0_13] : memref<9x8xf32, #tpu.memory_space<vmem>>, vector<1x8xf32>
    tpu.vector_store %arg4[%c7, %c0_13], %46 {strides = array<i32>} : memref<9x8xf32, #tpu.memory_space<vmem>>, vector<1x8xf32>,
    %c8 = arith.constant 8 : index
    %c0_14 = arith.constant 0 : index
    %58 = vector.load %arg4[%c8, %c0_14] : memref<9x8xf32, #tpu.memory_space<vmem>>, vector<1x8xf32>
    tpu.vector_store %arg4[%c8, %c0_14], %49 {strides = array<i32>} : memref<9x8xf32, #tpu.memory_space<vmem>>, vector<1x8xf32>,
    return
  }
  func.func @transform_0(%arg0: i32) -> (i32, i32) {
    %c0_i32 = arith.constant 0 : i32
    %c0_i32_0 = arith.constant 0 : i32
    return %arg0, %c0_i32 : i32, i32
  }
  func.func @transform_1(%arg0: i32) -> (i32, i32) {
    %c0_i32 = arith.constant 0 : i32
    %c0_i32_0 = arith.constant 0 : i32
    %c0_i32_1 = arith.constant 0 : i32
    return %c0_i32, %c0_i32_0 : i32, i32
  }
  func.func @transform_2(%arg0: i32) -> (i32, i32) {
    %c0_i32 = arith.constant 0 : i32
    %c0_i32_0 = arith.constant 0 : i32
    %c0_i32_1 = arith.constant 0 : i32
    return %c0_i32, %c0_i32_0 : i32, i32
  }
  func.func @transform_3(%arg0: i32) -> (i32, i32) {
    %c0_i32 = arith.constant 0 : i32
    %c0_i32_0 = arith.constant 0 : i32
    return %c0_i32, %arg0 : i32, i32
  }
}

</mosaic_0001>

<llo_original>
// kernel: s2s2_mean.1
$region0: #{s2s2_mean.1}
  #allocation0 [shape = 'u32[]', space=smem, size = 0x4, offset = 0x4, fixed_abs, tag = 'smem constant byte address 0x4 - core index']
  #allocation1 [shape = 'u32[144,128]{1,0:T(1,128)}', space=vmem, size = 0x12000, scoped, tag = 'internal scratch']
  %s0 = inlined_call_operand.vmem [shape: f32[8,32], index: 0, kind: input, shape index: {}]
  %s1 = inlined_call_operand.vmem [shape: f32[8,32], index: 1, kind: input, shape index: {}]
  %s2 = inlined_call_operand.vmem [shape: f32[8,1], index: 2, kind: input, shape index: {}]
  %s3 = inlined_call_operand.vmem [shape: f32[9,8], index: 3, kind: output, shape index: {}]
  %s4 = sld [smem:[#allocation0]]
  $region22: #{s2s2_mean.1} parent=0
    _
  %s6 = ssub.s32 1, %s4
  %s7 = scalar_select 0, %s6, %s4
  // Predicated region
  $region2: #{s2s2_mean.1} parent=0 // pred_check
    _
  $region3: #{s2s2_mean.1} parent=0 // pred_check_branch
    %9 = sbr.rel (0) target = $region5
  $region4: #{s2s2_mean.1} parent=0 // pred_region
    _
  $region5: #{s2s2_mean.1} parent=0 // pred_fallthru
    _
  // Predicated region
  $region6: #{s2s2_mean.1} parent=0 // pred_check
    _
  $region7: #{s2s2_mean.1} parent=0 // pred_check_branch
    %11 = sbr.rel (0) target = $region9
  $region8: #{s2s2_mean.1} parent=0 // pred_region
    _
  $region9: #{s2s2_mean.1} parent=0 // pred_fallthru
    _
  // Predicated region
  $region10: #{s2s2_mean.1} parent=0 // pred_check
    _
  $region11: #{s2s2_mean.1} parent=0 // pred_check_branch
    %13 = sbr.rel (0) target = $region13
  $region12: #{s2s2_mean.1} parent=0 // pred_region
    _
  $region13: #{s2s2_mean.1} parent=0 // pred_fallthru
    _
  %v14 = vld [vmem:[%s1] sm:$0xff]
  %v15 = vld [vmem:[%s0] sm:$0xff]
  %v16 = vld [vmem:[%s2] sm:$0xff]
  %18 = vset.pattern.permute.xlu0 0
  %19 = vperm.xlu0 %18, %v16
  %v20 = vpop.permute.xlu0 %19
  %vm22 = vcmask 261120
  %v24 = vsel %vm22, %v14, 0
  %v27 = vsel %vm22, %v15, 0
  %29 = vmatprep.subr.mxu0 0.0
  %30 = vmatpush1.xpose.msra.mxu0 %v27
  %31 = vmatprep.subr.mxu0 0.0
  %32 = vmatpush1.xpose.msra.mxu0 0.0
  %33 = vmatprep.subr.mxu0 0.0
  %34 = vmatpush1.xpose.msra.mxu0 0.0
  %35 = vmatprep.subr.mxu0 0.0
  %36 = vmatpush1.xpose.msra.mxu0 0.0
  %37 = vmatprep.subr.mxu0 0.0
  %38 = vmatpush1.xpose.msra.mxu0 0.0
  %39 = vmatprep.subr.mxu0 0.0
  %40 = vmatpush1.xpose.msra.mxu0 0.0
  %41 = vmatprep.subr.mxu0 0.0
  %42 = vmatpush1.xpose.msra.mxu0 0.0
  %43 = vmatprep.subr.mxu0 0.0
  %44 = vmatpush1.xpose.msra.mxu0 0.0
  %45 = vmatprep.subr.mxu0 0.0
  %46 = vmatpush1.xpose.msra.mxu0 0.0
  %47 = vmatprep.subr.mxu0 0.0
  %48 = vmatpush1.xpose.msra.mxu0 0.0
  %49 = vmatprep.subr.mxu0 0.0
  %50 = vmatpush1.xpose.msra.mxu0 0.0
  %51 = vmatprep.subr.mxu0 0.0
  %52 = vmatpush1.xpose.msra.mxu0 0.0
  %53 = vmatprep.subr.mxu0 0.0
  %54 = vmatpush1.xpose.msra.mxu0 0.0
  %55 = vmatprep.subr.mxu0 0.0
  %56 = vmatpush1.xpose.msra.mxu0 0.0
  %57 = vmatprep.subr.mxu0 0.0
  %58 = vmatpush1.xpose.msra.mxu0 0.0
  %59 = vmatprep.subr.mxu0 0.0
  %60 = vmatpush1.xpose.msra.mxu0 0.0
  %61 = vmatprep.subr.mxu0 0.0
  %62 = vmatpush1.xpose.msra.mxu0 0.0
  %63 = vmatprep.subr.mxu0 0.0
  %64 = vmatpush1.xpose.msra.mxu0 0.0
  %65 = vmatprep.subr.mxu0 0.0
  %66 = vmatpush1.xpose.msra.mxu0 0.0
  %67 = vmatprep.subr.mxu0 0.0
  %68 = vmatpush1.xpose.msra.mxu0 0.0
  %69 = vmatprep.subr.mxu0 0.0
  %70 = vmatpush1.xpose.msra.mxu0 0.0
  %71 = vmatprep.subr.mxu0 0.0
  %72 = vmatpush1.xpose.msra.mxu0 0.0
  %73 = vmatprep.subr.mxu0 0.0
  %74 = vmatpush1.xpose.msra.mxu0 0.0
  %75 = vmatprep.subr.mxu0 0.0
  %76 = vmatpush1.xpose.msra.mxu0 0.0
  %77 = vmatprep.subr.mxu0 0.0
  %78 = vmatpush1.xpose.msra.mxu0 0.0
  %79 = vmatprep.subr.mxu0 0.0
  %80 = vmatpush1.xpose.msra.mxu0 0.0
  %81 = vmatprep.subr.mxu0 0.0
  %82 = vmatpush1.xpose.msra.mxu0 0.0
  %83 = vmatprep.subr.mxu0 0.0
  %84 = vmatpush1.xpose.msra.mxu0 0.0
  %85 = vmatprep.subr.mxu0 0.0
  %86 = vmatpush1.xpose.msra.mxu0 0.0
  %87 = vmatprep.subr.mxu0 0.0
  %88 = vmatpush1.xpose.msra.mxu0 0.0
  %89 = vmatprep.subr.mxu0 0.0
  %90 = vmatpush1.xpose.msra.mxu0 0.0
  %91 = vmatprep.subr.mxu0 0.0
  %92 = vmatpush1.xpose.msra.mxu0 0.0
  %93 = vmatprep.mubr.f32.mxu0 0.0
  %94 = vmatmul.mubr.f32.gmra.mrb[0].mxu0 %v24
  %v95 = vpop.f32.mrb[0].mxu0
  %v96 = vadd.f32 %v20, %v95
  %v97 = vpop.f32.mrb[0].mxu0
  %98 = vdwg.mxu0
  %v99 = vmul.f32 %v96, %v96
  %v101 = vrot.slane %v99, 1
  %v103 = vadd.f32 %v99, %v101
  %v104 = vrot.slane %v99, 2
  %v106 = vadd.f32 %v103, %v104
  %v107 = vrsqrt.pop %v106
  %v108 = vmul.f32 %v96, %v107
  %v110 = vrot.slane %v107, 7
  %v112 = vmul.f32 %v96, %v110
  %v113 = vrot.slane %v107, 6
  %v115 = vmul.f32 %v96, %v113
  %v117 = vrot.slane %v96, 3
  %v119 = vmul.f32 %v108, %v117
  %v120 = vmul.f32 %v112, %v117
  %v122 = vrot.slane %v120, 1
  %v124 = vadd.f32 %v119, %v122
  %v125 = vmul.f32 %v115, %v117
  %v127 = vrot.slane %v125, 2
  %v129 = vadd.f32 %v124, %v127
  %v130 = vmul.f32 %v129, %v108
  %v132 = vrot.slane %v130, 5
  %v134 = vsub.f32 %v96, %v132
  %v136 = vrot.slane %v112, 1
  %v138 = vmul.f32 %v129, %v136
  %v140 = vrot.slane %v138, 4
  %v142 = vsub.f32 %v96, %v140
  %v144 = vrot.slane %v115, 2
  %v146 = vmul.f32 %v129, %v144
  %v148 = vrot.slane %v146, 3
  %v150 = vsub.f32 %v96, %v148
  %v151 = vmul.f32 %v134, %v134
  %v152 = vmul.f32 %v142, %v142
  %v154 = vrot.slane %v152, 1
  %v156 = vadd.f32 %v151, %v154
  %v157 = vmul.f32 %v150, %v150
  %v159 = vrot.slane %v157, 2
  %v161 = vadd.f32 %v156, %v159
  %v162 = vrsqrt.pop %v161
  %v163 = vmul.f32 %v134, %v162
  %v165 = vrot.slane %v162, 7
  %v167 = vmul.f32 %v142, %v165
  %v168 = vrot.slane %v162, 6
  %v170 = vmul.f32 %v150, %v168
  %v172 = vrot.slane %v170, 4
  %v174 = vmul.f32 %v112, %v172
  %v176 = vrot.slane %v167, 2
  %v178 = vmul.f32 %v115, %v176
  %v180 = vrot.slane %v178, 1
  %v182 = vsub.f32 %v174, %v180
  %v184 = vrot.slane %v163, 1
  %v186 = vmul.f32 %v115, %v184
  %v187 = vrot.slane %v170, 5
  %v189 = vmul.f32 %v108, %v187
  %v191 = vrot.slane %v189, 6
  %v193 = vsub.f32 %v186, %v191
  %v194 = vrot.slane %v167, 4
  %v196 = vmul.f32 %v108, %v194
  %v197 = vrot.slane %v163, 2
  %v199 = vmul.f32 %v112, %v197
  %v201 = vrot.slane %v199, 1
  %v203 = vsub.f32 %v196, %v201
  %vm204 = vcmask 57344
  %205 = vst.msk [vmem:[%s3] sm:$0x1] %vm204, %v108
  %vm206 = vcmask 58369
  %207 = vst.msk [vmem:[%s3] sm:$0x2] %vm206, %v112
  %vm208 = vcmask 59394
  %209 = vst.msk [vmem:[%s3] sm:$0x4] %vm208, %v115
  %vm210 = vcmask 60419
  %211 = vst.msk [vmem:[%s3] sm:$0x8] %vm210, %v163
  %vm212 = vcmask 61444
  %213 = vst.msk [vmem:[%s3] sm:$0x10] %vm212, %v167
  %vm214 = vcmask 62469
  %215 = vst.msk [vmem:[%s3] sm:$0x20] %vm214, %v170
  %216 = vst.msk [vmem:[%s3 + $0x5] sm:$0x2] %vm206, %v182
  %217 = vst.msk [vmem:[%s3 + $0x5] sm:$0x4] %vm208, %v193
  %218 = vst.msk [vmem:[%s3 + $0x8] sm:$0x1] %vm204, %v203
  // Predicated region
  $region14: #{s2s2_mean.1} parent=0 // pred_check
    _
  $region15: #{s2s2_mean.1} parent=0 // pred_check_branch
    %220 = sbr.rel (0) target = $region17
  $region16: #{s2s2_mean.1} parent=0 // pred_region
    _
  $region17: #{s2s2_mean.1} parent=0 // pred_fallthru
    _
  // Predicated region
  $region18: #{s2s2_mean.1} parent=0 // pred_check
    _
  $region19: #{s2s2_mean.1} parent=0 // pred_check_branch
    %222 = sbr.rel (0) target = $region21
  $region20: #{s2s2_mean.1} parent=0 // pred_region
    _
  $region21: #{s2s2_mean.1} parent=0 // pred_fallthru
    _

</llo_original>
